<compile_context>
chip_gen: v5e
topology: v5e:2x2
jax: 0.10.0
libtpu: 0.0.40
codegen_flags: <defaults>
</compile_context>

<pallas_src>
import functools

import jax
import jax.numpy as jnp
from jax.experimental import pallas as pl
from jax.experimental.pallas import tpu as pltpu

_SUBLANE = 8          # f32 vreg sublane height (accumulator fold granularity)
_LANE = 128
_DEFAULT_BLOCK_BYTES = 4 * 1024 * 1024   # ~4 MiB per input block
_VMEM_LIMIT_BYTES = 64 * 1024 * 1024


def _mse_kernel(u_ref, v_ref, o_ref, acc_ref, *,
                nc, nxny, row_tile, lane_tile,
                mask_rows, mask_cols, fold_rows):
    """Accumulate sum((U - V)^2) for one row tile into a lane-dense scratch.

    u_ref / v_ref : (row_tile, lane_tile) VMEM tiles (original dtype)
    o_ref         : (1, 8, 128) f32 per-row-tile partial-sum output block
    acc_ref       : f32 VMEM scratch, (8, lane_tile) if fold_rows else
                    (row_tile, lane_tile); resident across the lane-tile axis
    """
    i = pl.program_id(0)            # row-tile index   (over N*C)  -- parallel
    j = pl.program_id(1)            # lane-tile index  (over H*W)  -- arbitrary
    nj = pl.num_programs(1)

    @pl.when(j == 0)
    def _():
        acc_ref[...] = jnp.zeros_like(acc_ref)

    # Upcast on the VPU (free); keeps HBM traffic at the input dtype width.
    d = u_ref[...].astype(jnp.float32) - v_ref[...].astype(jnp.float32)

    def accumulate(dd):
        sq = dd * dd
        if fold_rows:
            # Layout-preserving split of the sublane-group dim; the sum over
            # the leading axis is whole-vreg VALU adds (no XLU per tile).
            sq3 = sq.reshape(row_tile // _SUBLANE, _SUBLANE, lane_tile)
            acc_ref[...] += jnp.sum(sq3, axis=0)
        else:
            acc_ref[...] += sq

    if mask_rows or mask_cols:
        # Only edge tiles pay for the mask; interior tiles stream unmasked.
        conds = []
        if mask_rows:
            conds.append(i == pl.num_programs(0) - 1)
        if mask_cols:
            conds.append(j == nj - 1)
        edge = conds[0] if len(conds) == 1 else (conds[0] | conds[1])

        @pl.when(edge)
        def _():
            mask = None
            if mask_rows:
                rows = jax.lax.broadcasted_iota(jnp.int32, d.shape, 0) + i * row_tile
                mask = rows < nc
            if mask_cols:
                cols = jax.lax.broadcasted_iota(jnp.int32, d.shape, 1) + j * lane_tile
                cmask = cols < nxny
                mask = cmask if mask is None else (mask & cmask)
            # Mask BEFORE squaring so OOB block padding can never poison the sum.
            accumulate(jnp.where(mask, d, 0.0))

        @pl.when(jnp.logical_not(edge))
        def _():
            accumulate(d)
    else:
        accumulate(d)

    # Epilogue: one cross-lane reduce per ROW TILE (not per step); scalar goes
    # into lane 0 of this row tile's output block, zeros elsewhere.
    @pl.when(j == nj - 1)
    def _():
        total = jnp.sum(acc_ref[...], axis=1, keepdims=True)
        total = jnp.sum(total, axis=0, keepdims=True)            # (1, 1)
        sub_i = jax.lax.broadcasted_iota(jnp.int32, (_SUBLANE, _LANE), 0)
        lane_i = jax.lax.broadcasted_iota(jnp.int32, (_SUBLANE, _LANE), 1)
        onehot = (sub_i == 0) & (lane_i == 0)
        o_ref[...] = jnp.where(onehot, total, 0.0)[None]          # (1, 8, 128)


def _pick_tiles(nc, nxny, itemsize, target_bytes):
    """Choose (row_tile, lane_tile) honoring the (8,128)/full-dim rule, a
    per-input block budget of ~target_bytes, and dtype-packed sublane height."""
    sub = max(_SUBLANE, 32 // itemsize)   # 8 for f32, 16 for bf16, 32 for int8

    # Lane tile: full H*W if a minimal (sub, nxny) block fits the budget,
    # otherwise the largest multiple of 128 that keeps (sub, lane_tile) in budget.
    if sub * nxny * itemsize <= target_bytes:
        lane_tile = nxny
    else:
        max_lane = target_bytes // (sub * itemsize)
        lane_tile = max(_LANE, (max_lane // _LANE) * _LANE)

    # Row tile: as many rows as fit in the budget (multiple of sub), but never
    # more than nc (a block equal to the full dim is always legal).
    rows_fit = max(
        sub,
        (target_bytes // (lane_tile * itemsize)) // sub * sub,
    )
    row_tile = min(rows_fit, nc)
    return row_tile, lane_tile


def mse_loss(U, V, *, target_block_bytes=_DEFAULT_BLOCK_BYTES):
    """Pallas equivalent of:
       torch.mean(torch.norm(U - V, p=2, dim=(2, 3)) ** 2 / (H * W))
    U, V: (N, C, H, W) arrays of identical shape. Returns a float32 scalar.
    """
    assert U.shape == V.shape and U.ndim == 4
    N, C, H, W = U.shape
    nc = N * C
    nxny = H * W

    # Row-major flatten only; no dtype cast (kernel upcasts to f32 itself).
    u2 = U.reshape(nc, nxny)
    v2 = V.reshape(nc, nxny)

    itemsize = max(jnp.dtype(U.dtype).itemsize, jnp.dtype(V.dtype).itemsize)
    row_tile, lane_tile = _pick_tiles(nc, nxny, itemsize, target_block_bytes)

    gi = pl.cdiv(nc, row_tile)
    gj = pl.cdiv(nxny, lane_tile)

    fold_rows = (row_tile % _SUBLANE) == 0
    acc_rows = _SUBLANE if fold_rows else row_tile

    kernel = functools.partial(
        _mse_kernel,
        nc=nc,
        nxny=nxny,
        row_tile=row_tile,
        lane_tile=lane_tile,
        mask_rows=(nc % row_tile) != 0,
        mask_cols=(nxny % lane_tile) != 0,
        fold_rows=fold_rows,
    )

    partials = pl.pallas_call(
        kernel,
        out_shape=jax.ShapeDtypeStruct((gi, _SUBLANE, _LANE), jnp.float32),
        grid_spec=pltpu.PrefetchScalarGridSpec(
            num_scalar_prefetch=0,
            grid=(gi, gj),
            in_specs=[
                pl.BlockSpec((row_tile, lane_tile), lambda i, j: (i, j)),
                pl.BlockSpec((row_tile, lane_tile), lambda i, j: (i, j)),
            ],
            # Per-row-tile lane-dense partials; row axis is "parallel" so v7x
            # can split row tiles across its two TensorCores.
            out_specs=pl.BlockSpec((1, _SUBLANE, _LANE), lambda i, j: (i, 0, 0)),
            scratch_shapes=[pltpu.VMEM((acc_rows, lane_tile), jnp.float32)],
        ),
        compiler_params=pltpu.CompilerParams(
            dimension_semantics=("parallel", "arbitrary"),
            vmem_limit_bytes=_VMEM_LIMIT_BYTES,
        ),
    )(u2, v2)

    # Tiny final reduction + normalization (a few hundred floats at most).
    return jnp.sum(partials) * (1.0 / float(nxny * nc))


def _ref_loss(U, V):
    d = U.astype(jnp.float32) - V.astype(jnp.float32)
    return jnp.mean(jnp.sum(d * d, axis=(2, 3)) / float(U.shape[2] * U.shape[3]))


if __name__ == "__main__":
    key = jax.random.PRNGKey(0)
    k1, k2, k3, k4, k5, k6, k7, k8 = jax.random.split(key, 8)

    # Main check: shapes implied by the module (batch=2, channels=4, 16x16).
    U = jax.random.normal(k1, (2, 4, 16, 16), dtype=jnp.float32)
    V = jax.random.normal(k2, (2, 4, 16, 16), dtype=jnp.float32)
    loss = mse_loss(U, V)
    jax.block_until_ready(loss)
    ref = _ref_loss(U, V)
    assert jnp.allclose(loss, ref, rtol=1e-5, atol=1e-6), (loss, ref)

    # Tiny block budget forces lane tiling + lane-tail masking + unfold path.
    U2 = jax.random.normal(k3, (2, 3, 12, 20), dtype=jnp.float32)
    V2 = jax.random.normal(k4, (2, 3, 12, 20), dtype=jnp.float32)
    loss2 = mse_loss(U2, V2, target_block_bytes=4096)
    jax.block_until_ready(loss2)
    ref2 = _ref_loss(U2, V2)
    assert jnp.allclose(loss2, ref2, rtol=1e-5, atol=1e-6), (loss2, ref2)

    # Forces row tiling + row-tail masking, multi-step accumulation and the
    # parallel row-tile axis with >1 output block.
    U3 = jax.random.normal(k5, (3, 4, 16, 16), dtype=jnp.float32)
    V3 = jax.random.normal(k6, (3, 4, 16, 16), dtype=jnp.float32)
    loss3 = mse_loss(U3, V3, target_block_bytes=4096)
    jax.block_until_ready(loss3)
    ref3 = _ref_loss(U3, V3)
    assert jnp.allclose(loss3, ref3, rtol=1e-5, atol=1e-6), (loss3, ref3)

    # bf16 inputs: dtype-aware tiling + in-kernel upcast path.
    U4 = jax.random.normal(k7, (2, 4, 16, 16), dtype=jnp.bfloat16)
    V4 = jax.random.normal(k8, (2, 4, 16, 16), dtype=jnp.bfloat16)
    loss4 = mse_loss(U4, V4)
    jax.block_until_ready(loss4)
    ref4 = _ref_loss(U4, V4)
    assert jnp.allclose(loss4, ref4, rtol=1e-4, atol=1e-5), (loss4, ref4)

    print("KERNEL_OK")
</pallas_src>

<mosaic_0001>
module attributes {stable_mosaic.version = 11 : i64} {
  func.func @_mse_kernel(%arg0: i32, %arg1: i32, %arg2: memref<8x256xf32, #tpu.memory_space<vmem>>, %arg3: memref<8x256xf32, #tpu.memory_space<vmem>>, %arg4: memref<1x8x128xf32, #tpu.memory_space<vmem>>, %arg5: memref<8x256xf32, #tpu.memory_space<vmem>>) attributes {dimension_semantics = [#tpu.dimension_semantics<parallel>, #tpu.dimension_semantics<arbitrary>], iteration_bounds = array<i64: 1, 1>, scalar_prefetch = 0 : i64, scratch_operands = 1 : i64, tpu.core_type = #tpu.core_type<tc>, window_params = [{transform_indices = @transform_0, window_bounds = array<i64: 8, 256>}, {transform_indices = @transform_1, window_bounds = array<i64: 8, 256>}, {transform_indices = @transform_2, window_bounds = array<i64: 1, 8, 128>}]} {
    %c0_i32 = arith.constant 0 : i32
    %0 = arith.cmpi eq, %arg1, %c0_i32 : i32
    %1 = arith.extui %0 : i1 to i32
    %c0_i32_0 = arith.constant 0 : i32
    %2 = arith.cmpi ne, %1, %c0_i32_0 : i32
    scf.if %2 {
      %cst_10 = arith.constant 0.000000e+00 : f32
      %15 = vector.broadcast %cst_10 : f32 to vector<8x256xf32>
      %c0_11 = arith.constant 0 : index
      %c0_12 = arith.constant 0 : index
      %16 = vector.load %arg5[%c0_11, %c0_12] : memref<8x256xf32, #tpu.memory_space<vmem>>, vector<8x256xf32>
      tpu.vector_store %arg5[%c0_11, %c0_12], %15 {strides = array<i32>} : memref<8x256xf32, #tpu.memory_space<vmem>>, vector<8x256xf32>,
    } else {
    }
    %c0 = arith.constant 0 : index
    %c0_1 = arith.constant 0 : index
    %3 = vector.load %arg2[%c0, %c0_1] : memref<8x256xf32, #tpu.memory_space<vmem>>, vector<8x256xf32>
    %c0_2 = arith.constant 0 : index
    %c0_3 = arith.constant 0 : index
    %4 = vector.load %arg3[%c0_2, %c0_3] : memref<8x256xf32, #tpu.memory_space<vmem>>, vector<8x256xf32>
    %5 = arith.subf %3, %4 : vector<8x256xf32>
    %6 = arith.mulf %5, %5 : vector<8x256xf32>
    %7 = vector.shape_cast %6 : vector<8x256xf32> to vector<1x8x256xf32>
    %c0_4 = arith.constant 0 : index
    %c0_5 = arith.constant 0 : index
    %8 = vector.load %arg5[%c0_4, %c0_5] : memref<8x256xf32, #tpu.memory_space<vmem>>, vector<8x256xf32>
    %cst = arith.constant dense<0.000000e+00> : vector<8x256xf32>
    %9 = vector.multi_reduction <add>, %7, %cst [0] : vector<1x8x256xf32> to vector<8x256xf32>
    %10 = arith.addf %8, %9 : vector<8x256xf32>
    %c0_6 = arith.constant 0 : index
    %c0_7 = arith.constant 0 : index
    %11 = vector.load %arg5[%c0_6, %c0_7] : memref<8x256xf32, #tpu.memory_space<vmem>>, vector<8x256xf32>
    tpu.vector_store %arg5[%c0_6, %c0_7], %10 {strides = array<i32>} : memref<8x256xf32, #tpu.memory_space<vmem>>, vector<8x256xf32>,
    %c0_i32_8 = arith.constant 0 : i32
    %12 = arith.cmpi eq, %arg1, %c0_i32_8 : i32
    %13 = arith.extui %12 : i1 to i32
    %c0_i32_9 = arith.constant 0 : i32
    %14 = arith.cmpi ne, %13, %c0_i32_9 : i32
    scf.if %14 {
      %c0_10 = arith.constant 0 : index
      %c0_11 = arith.constant 0 : index
      %15 = vector.load %arg5[%c0_10, %c0_11] : memref<8x256xf32, #tpu.memory_space<vmem>>, vector<8x256xf32>
      %cst_12 = arith.constant dense<0.000000e+00> : vector<8xf32>
      %16 = vector.multi_reduction <add>, %15, %cst_12 [1] : vector<8x256xf32> to vector<8xf32>
      %17 = vector.shape_cast %16 : vector<8xf32> to vector<8x1xf32>
      %cst_13 = arith.constant dense<0.000000e+00> : vector<1xf32>
      %18 = vector.multi_reduction <add>, %17, %cst_13 [0] : vector<8x1xf32> to vector<1xf32>
      %19 = vector.shape_cast %18 : vector<1xf32> to vector<1x1xf32>
      %20 = tpu.iota {dimensions = array<i32: 0>} : vector<8x128xi32>
      %21 = tpu.iota {dimensions = array<i32: 1>} : vector<8x128xi32>
      %c0_i32_14 = arith.constant 0 : i32
      %22 = vector.broadcast %c0_i32_14 : i32 to vector<8x128xi32>
      %23 = arith.cmpi eq, %20, %22 : vector<8x128xi32>
      %c0_i32_15 = arith.constant 0 : i32
      %24 = vector.broadcast %c0_i32_15 : i32 to vector<8x128xi32>
      %25 = arith.cmpi eq, %21, %24 : vector<8x128xi32>
      %26 = arith.andi %23, %25 : vector<8x128xi1>
      %cst_16 = arith.constant 0.000000e+00 : f32
      %27 = vector.shape_cast %19 : vector<1x1xf32> to vector<1x1xf32>
      %28 = vector.broadcast %27 : vector<1x1xf32> to vector<8x128xf32>
      %29 = vector.broadcast %cst_16 : f32 to vector<8x128xf32>
      %30 = arith.select %26, %28, %29 : vector<8x128xi1>, vector<8x128xf32>
      %31 = vector.shape_cast %30 : vector<8x128xf32> to vector<1x8x128xf32>
      %c0_17 = arith.constant 0 : index
      %c0_18 = arith.constant 0 : index
      %c0_19 = arith.constant 0 : index
      %32 = vector.load %arg4[%c0_17, %c0_18, %c0_19] : memref<1x8x128xf32, #tpu.memory_space<vmem>>, vector<1x8x128xf32>
      tpu.vector_store %arg4[%c0_17, %c0_18, %c0_19], %31 {strides = array<i32>} : memref<1x8x128xf32, #tpu.memory_space<vmem>>, vector<1x8x128xf32>,
    } else {
    }
    return
  }
  func.func @transform_0(%arg0: i32, %arg1: i32) -> (i32, i32) {
    %c0_i32 = arith.constant 0 : i32
    return %arg0, %arg1 : i32, i32
  }
  func.func @transform_1(%arg0: i32, %arg1: i32) -> (i32, i32) {
    %c0_i32 = arith.constant 0 : i32
    return %arg0, %arg1 : i32, i32
  }
  func.func @transform_2(%arg0: i32, %arg1: i32) -> (i32, i32, i32) {
    %c0_i32 = arith.constant 0 : i32
    %c0_i32_0 = arith.constant 0 : i32
    %c0_i32_1 = arith.constant 0 : i32
    return %arg0, %c0_i32, %c0_i32_0 : i32, i32, i32
  }
}

</mosaic_0001>

<llo_original>
// kernel: tpu_custom_call.1
$region0: #{tpu_custom_call.1}
  #allocation0 [shape = 'u32[]', space=smem, size = 0x4, offset = 0x4, fixed_abs, tag = 'smem constant byte address 0x4 - core index']
  #allocation1 [shape = 'u32[72,128]{1,0:T(1,128)}', space=vmem, size = 0x9000, scoped, tag = 'internal scratch']
  #allocation2 [shape = 'f32[8,256]{1,0:T(8,128)}', space=vmem, size = 0x2000, scoped, tag = 'scratch operand']
  %s0 = inlined_call_operand.hbm [shape: f32[8,256], index: 0, kind: input, shape index: {}]
  %s1 = inlined_call_operand.hbm [shape: f32[8,256], index: 1, kind: input, shape index: {}]
  %s2 = inlined_call_operand.hbm [shape: f32[1,8,128], index: 2, kind: output, shape index: {}]
  %s3 = sld [smem:[#allocation0]]
  $region34: #{tpu_custom_call.1} parent=0
    _
  %s5 = ssub.s32 1, %s3
  %s6 = scalar_select 0, %s5, %s3
  $region1: #{tpu_custom_call.1} parent=0
    #allocation3 [shape = 'u8[8192]{0}', space=vmem, size = 0x2000, scoped, tag = 'input window, operand 0, single buffered']
    #allocation4 [shape = 's32[1]{0}', space=sflag, size = 0x4, scoped, tag = 'scoped memory for tpu_custom_call.1']
    #allocation5 [shape = 's32[1]{0}', space=sflag, size = 0x4, scoped, tag = 'scoped memory for tpu_custom_call.1']
    #allocation6 [shape = 'u8[8192]{0}', space=vmem, size = 0x2000, scoped, tag = 'input window, operand 1, single buffered']
    #allocation7 [shape = 's32[1]{0}', space=sflag, size = 0x4, scoped, tag = 'scoped memory for tpu_custom_call.1']
    #allocation8 [shape = 'u8[4096]{0}', space=vmem, size = 0x1000, scoped, tag = 'output window, operand 0, single buffered']
    %7 = vsyncpa [#allocation4], 0
    %8 = vsyncpa [#allocation7], 0
    %9 = vsyncpa [#allocation5], 0
    // Predicated region
    $region2: #{tpu_custom_call.1} parent=1 // pred_check
      _
    $region3: #{tpu_custom_call.1} parent=1 // pred_check_branch
      %11 = sbr.rel (0) target = $region5
    $region4: #{tpu_custom_call.1} parent=1 // pred_region
      %13 = vsyncadd [#allocation4], 0
      %s15 = sshll.u32 %s0, 4
      %s16 = int_to_ptr.hbm [resolvable:$true] %s15
      %s17 = sshll.u32 [#allocation3], 4
      %s18 = int_to_ptr.vmem [resolvable:$true] %s17
      %20 = dma.hbm_to_vmem [thread:$0]  %s16, 256, %s18, [#allocation4]
    $region5: #{tpu_custom_call.1} parent=1 // pred_fallthru
      _
    // Predicated region
    $region6: #{tpu_custom_call.1} parent=1 // pred_check
      _
    $region7: #{tpu_custom_call.1} parent=1 // pred_check_branch
      %22 = sbr.rel (0) target = $region9
    $region8: #{tpu_custom_call.1} parent=1 // pred_region
      %24 = vsyncadd [#allocation7], 0
      %s26 = sshll.u32 %s1, 4
      %s27 = int_to_ptr.hbm [resolvable:$true] %s26
      %s28 = sshll.u32 [#allocation6], 4
      %s29 = int_to_ptr.vmem [resolvable:$true] %s28
      %31 = dma.hbm_to_vmem [thread:$0]  %s27, 256, %s29, [#allocation7]
    $region9: #{tpu_custom_call.1} parent=1 // pred_fallthru
      _
    // Predicated region
    $region10: #{tpu_custom_call.1} parent=1 // pred_check
      _
    $region11: #{tpu_custom_call.1} parent=1 // pred_check_branch
      %33 = sbr.rel (0) target = $region13
    $region12: #{tpu_custom_call.1} parent=1 // pred_region
      %35 = dma.done [#allocation4], 256
    $region13: #{tpu_custom_call.1} parent=1 // pred_fallthru
      _
    // Predicated region
    $region14: #{tpu_custom_call.1} parent=1 // pred_check
      _
    $region15: #{tpu_custom_call.1} parent=1 // pred_check_branch
      %37 = sbr.rel (0) target = $region17
    $region16: #{tpu_custom_call.1} parent=1 // pred_region
      %39 = dma.done [#allocation7], 256
    $region17: #{tpu_custom_call.1} parent=1 // pred_fallthru
      _
    %p40 = scmp.eq.s32.totalorder 0, 0
    // Predicated region
    $region18: #{tpu_custom_call.1} parent=1 // pred_check
      %p41 = pneg %p40
    $region19: #{tpu_custom_call.1} parent=1 // pred_check_branch
      %43 = sbr.rel (%p41) target = $region21
    $region20: #{tpu_custom_call.1} parent=1 // pred_region
      %44 = vst [vmem:[#allocation2] sm:$0xff] 0.0
      %45 = vst [vmem:[#allocation2 + $0x8] sm:$0xff] 0.0
    $region21: #{tpu_custom_call.1} parent=1 // pred_fallthru
      _
    %v46 = vld [vmem:[#allocation3] sm:$0xff]
    %v47 = vld [vmem:[#allocation3 + $0x8] sm:$0xff]
    %v48 = vld [vmem:[#allocation6] sm:$0xff]
    %v49 = vld [vmem:[#allocation6 + $0x8] sm:$0xff]
    %v50 = vsub.f32 %v46, %v48
    %v51 = vsub.f32 %v47, %v49
    %v52 = vmul.f32 %v50, %v50
    %v53 = vmul.f32 %v51, %v51
    %v54 = vld [vmem:[#allocation2] sm:$0xff]
    %v55 = vld [vmem:[#allocation2 + $0x8] sm:$0xff]
    %v56 = vadd.f32 %v52, 0.0
    %v57 = vadd.f32 %v53, 0.0
    %v58 = vadd.f32 %v54, %v56
    %v59 = vadd.f32 %v55, %v57
    %60 = vst [vmem:[#allocation2] sm:$0xff] %v58
    %61 = vst [vmem:[#allocation2 + $0x8] sm:$0xff] %v59
    // Predicated region
    $region22: #{tpu_custom_call.1} parent=1 // pred_check
      %p62 = pneg %p40
    $region23: #{tpu_custom_call.1} parent=1 // pred_check_branch
      %64 = sbr.rel (%p62) target = $region25
    $region24: #{tpu_custom_call.1} parent=1 // pred_region
      %v65 = vld [vmem:[#allocation2] sm:$0xff]
      %v66 = vld [vmem:[#allocation2 + $0x8] sm:$0xff]
      %v67 = vadd.f32 %v65, %v66
      %68 = vadd.xlane.f32.xlu0 %v67
      %v69 = vpop.xlane.xlu0 %68
      %v70 = vrot.slane %v69, 4
      %v71 = vadd.f32 %v69, %v70
      %v72 = vrot.slane %v71, 2
      %v73 = vadd.f32 %v71, %v72
      %v74 = vrot.slane %v73, 1
      %v75 = vadd.f32 %v73, %v74
      %v76 = vlaneseq
      %v77 = vshrl.u32 %v76, 7
      %v78 = vlaneseq
      %v79 = vand.u32 %v78, 127
      %vm80 = vcmp.eq.s32.totalorder %v77, 0
      %vm81 = vcmp.eq.s32.totalorder %v79, 0
      %vm82 = vmand %vm80, %vm81
      %v83 = vsel %vm82, %v75, 0.0
      %84 = vst [vmem:[#allocation8] sm:$0xff] %v83
    $region25: #{tpu_custom_call.1} parent=1 // pred_fallthru
      _
    // Predicated region
    $region26: #{tpu_custom_call.1} parent=1 // pred_check
      _
    $region27: #{tpu_custom_call.1} parent=1 // pred_check_branch
      %86 = sbr.rel (0) target = $region29
    $region28: #{tpu_custom_call.1} parent=1 // pred_region
      %88 = vsyncadd [#allocation5], 0
      %s90 = sshll.u32 [#allocation8], 4
      %s91 = int_to_ptr.vmem [resolvable:$true] %s90
      %s92 = sshll.u32 %s2, 4
      %s93 = int_to_ptr.hbm [resolvable:$true] %s92
      %95 = dma.vmem_to_hbm [thread:$0]  %s91, 128, %s93, [#allocation5]
    $region29: #{tpu_custom_call.1} parent=1 // pred_fallthru
      _
    // Predicated region
    $region30: #{tpu_custom_call.1} parent=1 // pred_check
      _
    $region31: #{tpu_custom_call.1} parent=1 // pred_check_branch
      %97 = sbr.rel (0) target = $region33
    $region32: #{tpu_custom_call.1} parent=1 // pred_region
      %99 = dma.done [#allocation5], 128
    $region33: #{tpu_custom_call.1} parent=1 // pred_fallthru
      _
    %100 = vsyncpa [#allocation4], 1
    %101 = vsyncpa [#allocation7], 1
    %102 = vsyncpa [#allocation5], 1

</llo_original>
